<compile_context>
chip_gen: v7x
topology: tpu7x:2x2x1
jax: 0.10.0
libtpu: 0.0.40
codegen_flags: <defaults>
</compile_context>

<pallas_src>
import functools

import jax
import jax.numpy as jnp
from jax.experimental import pallas as pl
from jax.experimental.pallas import tpu as pltpu


def _round_up(v: int, m: int) -> int:
    return m * ((v + m - 1) // m)


def _voting_kernel(x_ref, w_ref, b_ref, o_ref, *, compute_dtype):
    # One batch tile: logits = x_tile @ W_mean + b_mean (f32 accumulation on MXU).
    # Cast (if any) happens here on the VPU instead of a separate XLA pass.
    x = x_ref[...].astype(compute_dtype)
    logits = jnp.dot(x, w_ref[...], preferred_element_type=jnp.float32)
    o_ref[...] = (logits + b_ref[...]).astype(o_ref.dtype)  # (1, Cp) bias broadcasts


def precompute_voting_params(weights, biases, *, compute_dtype=jnp.float32):
    """Fold the ensemble mean onto the parameters (do ONCE per model, then reuse).

    weights: (M, D, C), biases: (M, C)  ->  (w_p: (D, Cp), b_p: (1, Cp), C).
    """
    M, D, C = weights.shape
    assert biases.shape == (M, C)

    # Linearity: mean over members moves onto the parameters (exact, in f32).
    w_mean = jnp.mean(weights.astype(jnp.float32), axis=0)  # (D, C)
    b_mean = jnp.mean(biases.astype(jnp.float32), axis=0)   # (C,)

    # Lane policy: tiny C keeps its true width (masked stores cost far less
    # than 16x padded f32 writeback); larger C pads to a multiple of 128 for
    # lane-dense unmasked stores.
    if C % 128 == 0 or C < 64:
        Cp = C
    else:
        Cp = 128 * pl.cdiv(C, 128)

    w_p = jnp.zeros((D, Cp), compute_dtype).at[:, :C].set(w_mean.astype(compute_dtype))
    b_p = jnp.zeros((1, Cp), jnp.float32).at[0, :C].set(b_mean)
    return w_p, b_p, C


def voting_apply(x, w_p, b_p, num_classes, *, block_b=1024,
                 compute_dtype=jnp.float32,
                 vmem_budget_bytes=40 * 1024 * 1024):
    """Collapsed ensemble forward: (B, D) @ (D, Cp) + (1, Cp) -> (B, C)."""
    B, D = x.shape
    Dw, Cp = w_p.shape
    assert Dw == D and b_p.shape == (1, Cp) and num_classes <= Cp

    out_dtype = jnp.float32

    # ---- batch-tile selection (VMEM-budgeted, v7x-safe) --------------------
    x_bytes = jnp.dtype(x.dtype).itemsize
    w_bytes = jnp.dtype(w_p.dtype).itemsize
    o_bytes = jnp.dtype(out_dtype).itemsize
    resident = 2 * D * Cp * w_bytes + 2 * Cp * 4            # weights + bias buffers
    per_row = 2 * D * x_bytes + 2 * Cp * o_bytes + Cp * 4   # x/out double-buffers + f32 acc
    tb_vmem = max(8, ((vmem_budget_bytes - resident) // max(per_row, 1)) // 8 * 8)
    # Keep >= 2 tiles when B allows it so the "parallel" batch axis feeds both
    # v7x TensorCores (harmless on single-TC v5e / v6e).
    tb_split = _round_up(pl.cdiv(B, 2), 8)
    tb = max(8, min(block_b, tb_vmem, tb_split))
    grid = (pl.cdiv(B, tb),)  # ragged tail block is masked by Pallas

    kernel = functools.partial(_voting_kernel, compute_dtype=compute_dtype)

    out = pl.pallas_call(
        kernel,
        out_shape=jax.ShapeDtypeStruct((B, Cp), out_dtype),
        grid_spec=pltpu.PrefetchScalarGridSpec(
            num_scalar_prefetch=0,
            grid=grid,                                       # batch tiles only
            in_specs=[
                pl.BlockSpec((tb, D), lambda i: (i, 0)),     # x batch tile (streamed, uncast)
                pl.BlockSpec((D, Cp), lambda i: (0, 0)),     # pre-averaged weights (resident)
                pl.BlockSpec((1, Cp), lambda i: (0, 0)),     # pre-averaged bias (resident)
            ],
            out_specs=pl.BlockSpec((tb, Cp), lambda i: (i, 0)),
        ),
        compiler_params=pltpu.CompilerParams(
            dimension_semantics=("parallel",),               # megacore sharding on v7x
            vmem_limit_bytes=48 * 1024 * 1024,               # fits v7x's 64 MiB VMEM
        ),
    )(x, w_p, b_p)

    if Cp != num_classes:
        out = out[:, :num_classes]
    return out


def voting_classifier(x, weights, biases, *, block_b=1024, compute_dtype=jnp.float32):
    """One-shot convenience wrapper (prefer caching precompute_voting_params)."""
    w_p, b_p, C = precompute_voting_params(weights, biases, compute_dtype=compute_dtype)
    return voting_apply(x, w_p, b_p, C, block_b=block_b, compute_dtype=compute_dtype)


if __name__ == "__main__":
    # Small deterministic setup: 3 ensemble members, batch=8, features=32, classes=8.
    key = jax.random.PRNGKey(0)
    k_x, k_w, k_b = jax.random.split(key, 3)
    M, B, D, C = 3, 8, 32, 8

    x = jax.random.normal(k_x, (B, D), dtype=jnp.float32)
    weights = jax.random.normal(k_w, (M, D, C), dtype=jnp.float32) * 0.1
    biases = jax.random.normal(k_b, (M, C), dtype=jnp.float32) * 0.1

    # Ensemble fold hoisted out of the per-call path (done once per model).
    w_p, b_p, num_classes = precompute_voting_params(weights, biases)
    w_p, b_p = jax.block_until_ready((w_p, b_p))

    out = voting_apply(x, w_p, b_p, num_classes)
    out = jax.block_until_ready(out)

    # Reference: torch.stack([model(x) for model in models], 0).mean(0) with linear members.
    ref = jnp.mean(
        jnp.stack([x @ weights[m] + biases[m] for m in range(M)], axis=0), axis=0
    )
    assert out.shape == (B, C), out.shape
    err = float(jnp.max(jnp.abs(out - ref)))
    # Full-f32 compute path -> tight tolerance (only mean-vs-matmul reordering noise).
    assert jnp.allclose(out, ref, atol=1e-4, rtol=1e-4), err

    print("KERNEL_OK")
</pallas_src>

<mosaic_0001>
module attributes {stable_mosaic.version = 11 : i64} {
  func.func @_voting_kernel(%arg0: i32, %arg1: memref<8x32xf32, #tpu.memory_space<vmem>>, %arg2: memref<32x8xf32, #tpu.memory_space<vmem>>, %arg3: memref<1x8xf32, #tpu.memory_space<vmem>>, %arg4: memref<8x8xf32, #tpu.memory_space<vmem>>) attributes {dimension_semantics = [#tpu.dimension_semantics<parallel>], iteration_bounds = array<i64: 1>, scalar_prefetch = 0 : i64, scratch_operands = 0 : i64, tpu.core_type = #tpu.core_type<tc>, window_params = [{transform_indices = @transform_0, window_bounds = array<i64: 8, 32>}, {pipeline_mode = #tpu.pipeline_mode<synchronous>, transform_indices = @transform_1, window_bounds = array<i64: 32, 8>}, {pipeline_mode = #tpu.pipeline_mode<synchronous>, transform_indices = @transform_2, window_bounds = array<i64: 1, 8>}, {transform_indices = @transform_3, window_bounds = array<i64: 8, 8>}]} {
    %c0 = arith.constant 0 : index
    %c0_0 = arith.constant 0 : index
    %0 = vector.load %arg1[%c0, %c0_0] : memref<8x32xf32, #tpu.memory_space<vmem>>, vector<8x32xf32>
    %c0_1 = arith.constant 0 : index
    %c0_2 = arith.constant 0 : index
    %1 = vector.load %arg2[%c0_1, %c0_2] : memref<32x8xf32, #tpu.memory_space<vmem>>, vector<32x8xf32>
    %cst = arith.constant dense<0.000000e+00> : vector<8x8xf32>
    %2 = tpu.matmul %0, %1, %cst {dimension_numbers = #tpu.dot_dimension_numbers<[1], [0], [0], [1], [0, 0, 1, 1], [], []>} : vector<8x32xf32>, vector<32x8xf32>, vector<8x8xf32> -> vector<8x8xf32>
    %c0_3 = arith.constant 0 : index
    %c0_4 = arith.constant 0 : index
    %3 = vector.load %arg3[%c0_3, %c0_4] : memref<1x8xf32, #tpu.memory_space<vmem>>, vector<1x8xf32>
    %4 = vector.broadcast %3 : vector<1x8xf32> to vector<8x8xf32>
    %5 = arith.addf %2, %4 : vector<8x8xf32>
    %c0_5 = arith.constant 0 : index
    %c0_6 = arith.constant 0 : index
    %6 = vector.load %arg4[%c0_5, %c0_6] : memref<8x8xf32, #tpu.memory_space<vmem>>, vector<8x8xf32>
    tpu.vector_store %arg4[%c0_5, %c0_6], %5 {strides = array<i32>} : memref<8x8xf32, #tpu.memory_space<vmem>>, vector<8x8xf32>,
    return
  }
  func.func @transform_0(%arg0: i32) -> (i32, i32) {
    %c0_i32 = arith.constant 0 : i32
    %c0_i32_0 = arith.constant 0 : i32
    return %arg0, %c0_i32 : i32, i32
  }
  func.func @transform_1(%arg0: i32) -> (i32, i32) {
    %c0_i32 = arith.constant 0 : i32
    %c0_i32_0 = arith.constant 0 : i32
    %c0_i32_1 = arith.constant 0 : i32
    return %c0_i32, %c0_i32_0 : i32, i32
  }
  func.func @transform_2(%arg0: i32) -> (i32, i32) {
    %c0_i32 = arith.constant 0 : i32
    %c0_i32_0 = arith.constant 0 : i32
    %c0_i32_1 = arith.constant 0 : i32
    return %c0_i32, %c0_i32_0 : i32, i32
  }
  func.func @transform_3(%arg0: i32) -> (i32, i32) {
    %c0_i32 = arith.constant 0 : i32
    %c0_i32_0 = arith.constant 0 : i32
    return %arg0, %c0_i32 : i32, i32
  }
}

</mosaic_0001>

<llo_original>
// kernel: tpu_custom_call.1
$region0: #{tpu_custom_call.1}
  #allocation0 [shape = 'u32[]', space=smem, size = 0x4, offset = 0x4, fixed_abs, tag = 'smem constant byte address 0x4 - core index']
  #allocation1 [shape = 'u32[144,128]{1,0:T(1,128)}', space=vmem, size = 0x12000, scoped, tag = 'internal scratch']
  %s0 = inlined_call_operand.vmem [shape: f32[8,32], index: 0, kind: input, shape index: {}]
  %s1 = inlined_call_operand.vmem [shape: f32[32,8], index: 1, kind: input, shape index: {}]
  %s2 = inlined_call_operand.vmem [shape: f32[1,8], index: 2, kind: input, shape index: {}]
  %s3 = inlined_call_operand.hbm [shape: f32[8,8], index: 3, kind: output, shape index: {}]
  %s4 = sld [smem:[#allocation0]]
  $region22: #{tpu_custom_call.1} parent=0
    _
  %s6 = ssub.s32 1, %s4
  %s7 = scalar_select 0, %s6, %s4
  $region1: #{tpu_custom_call.1} parent=0
    #allocation2 [shape = 'u8[4096]{0}', space=vmem, size = 0x1000, scoped, tag = 'output window, operand 0, single buffered']
    #allocation3 [shape = 's32[1]{0}', space=sflag, size = 0x4, scoped, tag = 'scoped memory for tpu_custom_call.1']
    %8 = vsyncpa [#allocation3], 0
    // Predicated region
    $region2: #{tpu_custom_call.1} parent=1 // pred_check
      _
    $region3: #{tpu_custom_call.1} parent=1 // pred_check_branch
      %10 = sbr.rel (0) target = $region5
    $region4: #{tpu_custom_call.1} parent=1 // pred_region
      _
    $region5: #{tpu_custom_call.1} parent=1 // pred_fallthru
      _
    // Predicated region
    $region6: #{tpu_custom_call.1} parent=1 // pred_check
      _
    $region7: #{tpu_custom_call.1} parent=1 // pred_check_branch
      %12 = sbr.rel (0) target = $region9
    $region8: #{tpu_custom_call.1} parent=1 // pred_region
      _
    $region9: #{tpu_custom_call.1} parent=1 // pred_fallthru
      _
    // Predicated region
    $region10: #{tpu_custom_call.1} parent=1 // pred_check
      _
    $region11: #{tpu_custom_call.1} parent=1 // pred_check_branch
      %14 = sbr.rel (0) target = $region13
    $region12: #{tpu_custom_call.1} parent=1 // pred_region
      _
    $region13: #{tpu_custom_call.1} parent=1 // pred_fallthru
      _
    %v15 = vld [vmem:[%s0] sm:$0xff]
    %v16 = vld [vmem:[%s1] sm:$0xff]
    %v17 = vld [vmem:[%s1 + $0x8] sm:$0xff]
    %v18 = vld [vmem:[%s1 + $0x10] sm:$0xff]
    %v19 = vld [vmem:[%s1 + $0x18] sm:$0xff]
    %v20 = vld [vmem:[%s2] sm:$0x1]
    %v22 = vlaneseq
    %v23 = vshrl.u32 %v22, 7
    %v24 = vsub.s32 0, %v23
    %v25 = vrot.slane %v20, %v24
    %vm27 = vcmask 261120
    %v29 = vsel %vm27, %v15, 0
    %31 = vmatprep.subr.mxu0 0.0
    %32 = vmatpush1.msra.mxu0 %v16
    %33 = vmatprep.subr.mxu0 0.0
    %34 = vmatpush1.msra.mxu0 %v17
    %35 = vmatprep.subr.mxu0 0.0
    %36 = vmatpush1.msra.mxu0 %v18
    %37 = vmatprep.subr.mxu0 0.0
    %38 = vmatpush1.msra.mxu0 %v19
    %39 = vmatprep.subr.mxu0 0.0
    %40 = vmatpush1.msra.mxu0 0.0
    %41 = vmatprep.subr.mxu0 0.0
    %42 = vmatpush1.msra.mxu0 0.0
    %43 = vmatprep.subr.mxu0 0.0
    %44 = vmatpush1.msra.mxu0 0.0
    %45 = vmatprep.subr.mxu0 0.0
    %46 = vmatpush1.msra.mxu0 0.0
    %47 = vmatprep.subr.mxu0 0.0
    %48 = vmatpush1.msra.mxu0 0.0
    %49 = vmatprep.subr.mxu0 0.0
    %50 = vmatpush1.msra.mxu0 0.0
    %51 = vmatprep.subr.mxu0 0.0
    %52 = vmatpush1.msra.mxu0 0.0
    %53 = vmatprep.subr.mxu0 0.0
    %54 = vmatpush1.msra.mxu0 0.0
    %55 = vmatprep.subr.mxu0 0.0
    %56 = vmatpush1.msra.mxu0 0.0
    %57 = vmatprep.subr.mxu0 0.0
    %58 = vmatpush1.msra.mxu0 0.0
    %59 = vmatprep.subr.mxu0 0.0
    %60 = vmatpush1.msra.mxu0 0.0
    %61 = vmatprep.subr.mxu0 0.0
    %62 = vmatpush1.msra.mxu0 0.0
    %63 = vmatprep.subr.mxu0 0.0
    %64 = vmatpush1.msra.mxu0 0.0
    %65 = vmatprep.subr.mxu0 0.0
    %66 = vmatpush1.msra.mxu0 0.0
    %67 = vmatprep.subr.mxu0 0.0
    %68 = vmatpush1.msra.mxu0 0.0
    %69 = vmatprep.subr.mxu0 0.0
    %70 = vmatpush1.msra.mxu0 0.0
    %71 = vmatprep.subr.mxu0 0.0
    %72 = vmatpush1.msra.mxu0 0.0
    %73 = vmatprep.subr.mxu0 0.0
    %74 = vmatpush1.msra.mxu0 0.0
    %75 = vmatprep.subr.mxu0 0.0
    %76 = vmatpush1.msra.mxu0 0.0
    %77 = vmatprep.subr.mxu0 0.0
    %78 = vmatpush1.msra.mxu0 0.0
    %79 = vmatprep.subr.mxu0 0.0
    %80 = vmatpush1.msra.mxu0 0.0
    %81 = vmatprep.subr.mxu0 0.0
    %82 = vmatpush1.msra.mxu0 0.0
    %83 = vmatprep.subr.mxu0 0.0
    %84 = vmatpush1.msra.mxu0 0.0
    %85 = vmatprep.subr.mxu0 0.0
    %86 = vmatpush1.msra.mxu0 0.0
    %87 = vmatprep.subr.mxu0 0.0
    %88 = vmatpush1.msra.mxu0 0.0
    %89 = vmatprep.subr.mxu0 0.0
    %90 = vmatpush1.msra.mxu0 0.0
    %91 = vmatprep.subr.mxu0 0.0
    %92 = vmatpush1.msra.mxu0 0.0
    %93 = vmatprep.subr.mxu0 0.0
    %94 = vmatpush1.msra.mxu0 0.0
    %95 = vmatprep.mubr.f32.mxu0 0.0
    %96 = vmatmul.mubr.f32.gmra.mrb[0].mxu0 %v29
    %v97 = vpop.f32.mrb[0].mxu0
    %v98 = vadd.f32 %v25, %v97
    %v99 = vpop.f32.mrb[0].mxu0
    %100 = vdwg.mxu0
    %vm101 = vcmask 64512
    %102 = vst.msk [vmem:[#allocation2] sm:$0xff] %vm101, %v98
    // Predicated region
    $region14: #{tpu_custom_call.1} parent=1 // pred_check
      _
    $region15: #{tpu_custom_call.1} parent=1 // pred_check_branch
      %104 = sbr.rel (0) target = $region17
    $region16: #{tpu_custom_call.1} parent=1 // pred_region
      %s106 = ssub.s32 128, 128
      %107 = vsyncadd [#allocation3], %s106
      %s109 = sshll.u32 [#allocation2], 4
      %s110 = int_to_ptr.vmem [resolvable:$true] %s109
      %112 = dma.vmem_to_hbm [thread:$0]  %s110, 128, %s3, [#allocation3]
    $region17: #{tpu_custom_call.1} parent=1 // pred_fallthru
      _
    // Predicated region
    $region18: #{tpu_custom_call.1} parent=1 // pred_check
      _
    $region19: #{tpu_custom_call.1} parent=1 // pred_check_branch
      %114 = sbr.rel (0) target = $region21
    $region20: #{tpu_custom_call.1} parent=1 // pred_region
      %115 = dma.done [#allocation3], 128
    $region21: #{tpu_custom_call.1} parent=1 // pred_fallthru
      _
    %116 = vsyncpa [#allocation3], 1

</llo_original>
